<compile_context>
chip_gen: v6e
topology: v6e:2x2x1
jax: 0.10.0
libtpu: 0.0.40
codegen_flags: <defaults>
</compile_context>

<pallas_src>
import jax
import jax.numpy as jnp
from jax.experimental import pallas as pl
from jax.experimental.pallas import tpu as pltpu

HIDDEN = 32
INITIAL_POLICY_LOGSTD = -1.20397
TB_MAX = 2048  # batch-tile cap; ~10 MiB peak VMEM per step at f32


def _round_up(x, m):
    return (x + m - 1) // m * m


def _pick_tiles(batch):
    """Pick (tile_rows, padded_batch, grid_steps).

    Rows are padded to a multiple of 8 (sublane).  For any batch > 8 we force
    >= 2 grid steps so the "parallel" grid axis can shard across both v7x
    TensorCores; the tile is capped at TB_MAX to bound VMEM.
    """
    b8 = _round_up(max(batch, 1), 8)
    n = 1 if b8 <= 8 else max(2, pl.cdiv(b8, TB_MAX))
    tb = _round_up(pl.cdiv(b8, n), 8)
    return tb, tb * n, n


def actor_kernel(x_ref, w1_ref, b1_ref, w2_ref, b2_ref, wm_ref, bm_ref,
                 mean_ref):
    # x_ref:    (TB, D)   narrow, lane-masked input tile (D == dim_states)
    # w*_ref:   VMEM-resident weights/biases (constant index_map)
    # mean_ref: (TB, A)   narrow output tile (A == dim_actions)
    x = x_ref[...]
    h1 = jnp.maximum(
        jnp.dot(x, w1_ref[...], preferred_element_type=jnp.float32)
        + b1_ref[...], 0.0)
    h2 = jnp.maximum(
        jnp.dot(h1, w2_ref[...], preferred_element_type=jnp.float32)
        + b2_ref[...], 0.0)
    mean = jnp.dot(h2, wm_ref[...], preferred_element_type=jnp.float32)
    mean_ref[...] = (mean + bm_ref[...]).astype(mean_ref.dtype)


@jax.jit
def actor_forward(states, w1, b1, w2, b2, wm, bm, logstd):
    B, D = states.shape
    H1 = w1.shape[1]
    H2 = w2.shape[1]
    A = wm.shape[1]

    TB, B_pad, grid = _pick_tiles(B)

    x = states.astype(jnp.float32)
    if B_pad != B:
        # Zero-pad only the (narrow) rows needed to fill the last tile.
        x = jnp.zeros((B_pad, D), jnp.float32).at[:B, :].set(x)

    # Advisory cost hint for XLA scheduling around the custom call.
    flops = 2 * B_pad * (D * H1 + H1 * H2 + H2 * A)
    bytes_accessed = 4 * (B_pad * D + B_pad * A
                          + w1.size + b1.size + w2.size + b2.size
                          + wm.size + bm.size)

    # NOTE: for tiny batches (B < ~256) a fused XLA MLP would beat the
    # pallas_call launch overhead; we keep the kernel path unconditionally so
    # the Pallas code is exercised for all shapes.
    mean_pad = pl.pallas_call(
        actor_kernel,
        out_shape=jax.ShapeDtypeStruct((B_pad, A), jnp.float32),
        grid=(grid,),
        in_specs=[
            pl.BlockSpec((TB, D), lambda i: (i, 0)),
            pl.BlockSpec((D, H1), lambda i: (0, 0)),   # resident weights
            pl.BlockSpec((1, H1), lambda i: (0, 0)),
            pl.BlockSpec((H1, H2), lambda i: (0, 0)),
            pl.BlockSpec((1, H2), lambda i: (0, 0)),
            pl.BlockSpec((H2, A), lambda i: (0, 0)),
            pl.BlockSpec((1, A), lambda i: (0, 0)),
        ],
        out_specs=pl.BlockSpec((TB, A), lambda i: (i, 0)),
        compiler_params=pltpu.CompilerParams(
            dimension_semantics=("parallel",),
            vmem_limit_bytes=32 * 1024 * 1024),
        cost_estimate=pl.CostEstimate(
            flops=flops, transcendentals=0, bytes_accessed=bytes_accessed),
    )(x, w1, b1, w2, b2, wm, bm)

    action_mean = mean_pad[:B, :] if B_pad != B else mean_pad
    # action_logstd = fc_logstd.expand_as(action_mean): pure constant
    # broadcast, done in the wrapper — no kernel writeback needed.
    action_logstd = jnp.broadcast_to(logstd, action_mean.shape)
    return action_mean, action_logstd


def init_actor_params(key, dim_states, dim_actions, hidden=HIDDEN):
    """Deterministic synthetic parameter init (shapes match Actor.__init__)."""
    k1, k2, k3, k4, k5, k6 = jax.random.split(key, 6)
    scale = 0.1
    w1 = scale * jax.random.normal(k1, (dim_states, hidden), jnp.float32)
    b1 = scale * jax.random.normal(k2, (1, hidden), jnp.float32)
    w2 = scale * jax.random.normal(k3, (hidden, hidden), jnp.float32)
    b2 = scale * jax.random.normal(k4, (1, hidden), jnp.float32)
    wm = scale * jax.random.normal(k5, (hidden, dim_actions), jnp.float32)
    bm = scale * jax.random.normal(k6, (1, dim_actions), jnp.float32)
    logstd = jnp.full((1, dim_actions), INITIAL_POLICY_LOGSTD, jnp.float32)
    return w1, b1, w2, b2, wm, bm, logstd


def reference_forward(states, w1, b1, w2, b2, wm, bm, logstd):
    h1 = jax.nn.relu(states @ w1 + b1)
    h2 = jax.nn.relu(h1 @ w2 + b2)
    mean = h2 @ wm + bm
    return mean, jnp.broadcast_to(logstd, mean.shape)


if __name__ == "__main__":
    # Hopper-v2-like small shapes: obs dim 11, action dim 3, batch 2.
    batch, dim_states, dim_actions = 2, 11, 3

    key = jax.random.PRNGKey(0)
    kx, kp = jax.random.split(key)
    states = jax.random.normal(kx, (batch, dim_states), jnp.float32)
    w1, b1, w2, b2, wm, bm, logstd = init_actor_params(kp, dim_states,
                                                       dim_actions)

    action_mean, action_logstd = actor_forward(states, w1, b1, w2, b2, wm, bm,
                                               logstd)
    jax.block_until_ready((action_mean, action_logstd))

    ref_mean, ref_logstd = reference_forward(states, w1, b1, w2, b2, wm, bm,
                                             logstd)
    assert action_mean.shape == (batch, dim_actions)
    assert action_logstd.shape == (batch, dim_actions)
    assert jnp.allclose(action_mean, ref_mean, atol=1e-5, rtol=1e-5)
    assert jnp.allclose(action_logstd, ref_logstd, atol=1e-6, rtol=1e-6)

    # Also exercise a multi-tile batch path (grid >= 2, megacore sharding).
    big_states = jax.random.normal(kx, (5000, dim_states), jnp.float32)
    big_mean, big_logstd = actor_forward(big_states, w1, b1, w2, b2, wm, bm,
                                         logstd)
    jax.block_until_ready((big_mean, big_logstd))
    big_ref_mean, _ = reference_forward(big_states, w1, b1, w2, b2, wm, bm,
                                        logstd)
    assert big_mean.shape == (5000, dim_actions)
    assert jnp.allclose(big_mean, big_ref_mean, atol=1e-4, rtol=1e-4)

    print("KERNEL_OK")
</pallas_src>

<mosaic_0001>
module attributes {stable_mosaic.version = 11 : i64} {
  func.func @actor_kernel(%arg0: i32, %arg1: memref<8x11xf32, #tpu.memory_space<vmem>>, %arg2: memref<11x32xf32, #tpu.memory_space<vmem>>, %arg3: memref<1x32xf32, #tpu.memory_space<vmem>>, %arg4: memref<32x32xf32, #tpu.memory_space<vmem>>, %arg5: memref<1x32xf32, #tpu.memory_space<vmem>>, %arg6: memref<32x3xf32, #tpu.memory_space<vmem>>, %arg7: memref<1x3xf32, #tpu.memory_space<vmem>>, %arg8: memref<8x3xf32, #tpu.memory_space<vmem>>) attributes {dimension_semantics = [#tpu.dimension_semantics<parallel>], iteration_bounds = array<i64: 1>, scalar_prefetch = 0 : i64, scratch_operands = 0 : i64, tpu.core_type = #tpu.core_type<tc>, window_params = [{transform_indices = @transform_0, window_bounds = array<i64: 8, 11>}, {pipeline_mode = #tpu.pipeline_mode<synchronous>, transform_indices = @transform_1, window_bounds = array<i64: 11, 32>}, {pipeline_mode = #tpu.pipeline_mode<synchronous>, transform_indices = @transform_2, window_bounds = array<i64: 1, 32>}, {pipeline_mode = #tpu.pipeline_mode<synchronous>, transform_indices = @transform_3, window_bounds = array<i64: 32, 32>}, {pipeline_mode = #tpu.pipeline_mode<synchronous>, transform_indices = @transform_4, window_bounds = array<i64: 1, 32>}, {pipeline_mode = #tpu.pipeline_mode<synchronous>, transform_indices = @transform_5, window_bounds = array<i64: 32, 3>}, {pipeline_mode = #tpu.pipeline_mode<synchronous>, transform_indices = @transform_6, window_bounds = array<i64: 1, 3>}, {transform_indices = @transform_7, window_bounds = array<i64: 8, 3>}]} {
    %c0 = arith.constant 0 : index
    %c0_0 = arith.constant 0 : index
    %0 = vector.load %arg1[%c0, %c0_0] : memref<8x11xf32, #tpu.memory_space<vmem>>, vector<8x11xf32>
    %c0_1 = arith.constant 0 : index
    %c0_2 = arith.constant 0 : index
    %1 = vector.load %arg2[%c0_1, %c0_2] : memref<11x32xf32, #tpu.memory_space<vmem>>, vector<11x32xf32>
    %cst = arith.constant dense<0.000000e+00> : vector<8x32xf32>
    %2 = tpu.matmul %0, %1, %cst {dimension_numbers = #tpu.dot_dimension_numbers<[1], [0], [0], [1], [0, 0, 1, 1], [], []>} : vector<8x11xf32>, vector<11x32xf32>, vector<8x32xf32> -> vector<8x32xf32>
    %c0_3 = arith.constant 0 : index
    %c0_4 = arith.constant 0 : index
    %3 = vector.load %arg3[%c0_3, %c0_4] : memref<1x32xf32, #tpu.memory_space<vmem>>, vector<1x32xf32>
    %4 = vector.broadcast %3 : vector<1x32xf32> to vector<8x32xf32>
    %5 = arith.addf %2, %4 : vector<8x32xf32>
    %cst_5 = arith.constant 0.000000e+00 : f32
    %6 = vector.broadcast %cst_5 : f32 to vector<8x32xf32>
    %7 = arith.maximumf %5, %6 : vector<8x32xf32>
    %c0_6 = arith.constant 0 : index
    %c0_7 = arith.constant 0 : index
    %8 = vector.load %arg4[%c0_6, %c0_7] : memref<32x32xf32, #tpu.memory_space<vmem>>, vector<32x32xf32>
    %cst_8 = arith.constant dense<0.000000e+00> : vector<8x32xf32>
    %9 = tpu.matmul %7, %8, %cst_8 {dimension_numbers = #tpu.dot_dimension_numbers<[1], [0], [0], [1], [0, 0, 1, 1], [], []>} : vector<8x32xf32>, vector<32x32xf32>, vector<8x32xf32> -> vector<8x32xf32>
    %c0_9 = arith.constant 0 : index
    %c0_10 = arith.constant 0 : index
    %10 = vector.load %arg5[%c0_9, %c0_10] : memref<1x32xf32, #tpu.memory_space<vmem>>, vector<1x32xf32>
    %11 = vector.broadcast %10 : vector<1x32xf32> to vector<8x32xf32>
    %12 = arith.addf %9, %11 : vector<8x32xf32>
    %cst_11 = arith.constant 0.000000e+00 : f32
    %13 = vector.broadcast %cst_11 : f32 to vector<8x32xf32>
    %14 = arith.maximumf %12, %13 : vector<8x32xf32>
    %c0_12 = arith.constant 0 : index
    %c0_13 = arith.constant 0 : index
    %15 = vector.load %arg6[%c0_12, %c0_13] : memref<32x3xf32, #tpu.memory_space<vmem>>, vector<32x3xf32>
    %cst_14 = arith.constant dense<0.000000e+00> : vector<8x3xf32>
    %16 = tpu.matmul %14, %15, %cst_14 {dimension_numbers = #tpu.dot_dimension_numbers<[1], [0], [0], [1], [0, 0, 1, 1], [], []>} : vector<8x32xf32>, vector<32x3xf32>, vector<8x3xf32> -> vector<8x3xf32>
    %c0_15 = arith.constant 0 : index
    %c0_16 = arith.constant 0 : index
    %17 = vector.load %arg7[%c0_15, %c0_16] : memref<1x3xf32, #tpu.memory_space<vmem>>, vector<1x3xf32>
    %18 = vector.broadcast %17 : vector<1x3xf32> to vector<8x3xf32>
    %19 = arith.addf %16, %18 : vector<8x3xf32>
    %c0_17 = arith.constant 0 : index
    %c0_18 = arith.constant 0 : index
    %20 = vector.load %arg8[%c0_17, %c0_18] : memref<8x3xf32, #tpu.memory_space<vmem>>, vector<8x3xf32>
    tpu.vector_store %arg8[%c0_17, %c0_18], %19 {strides = array<i32>} : memref<8x3xf32, #tpu.memory_space<vmem>>, vector<8x3xf32>,
    return
  }
  func.func @transform_0(%arg0: i32) -> (i32, i32) {
    %c0_i32 = arith.constant 0 : i32
    %c0_i32_0 = arith.constant 0 : i32
    return %arg0, %c0_i32 : i32, i32
  }
  func.func @transform_1(%arg0: i32) -> (i32, i32) {
    %c0_i32 = arith.constant 0 : i32
    %c0_i32_0 = arith.constant 0 : i32
    %c0_i32_1 = arith.constant 0 : i32
    return %c0_i32, %c0_i32_0 : i32, i32
  }
  func.func @transform_2(%arg0: i32) -> (i32, i32) {
    %c0_i32 = arith.constant 0 : i32
    %c0_i32_0 = arith.constant 0 : i32
    %c0_i32_1 = arith.constant 0 : i32
    return %c0_i32, %c0_i32_0 : i32, i32
  }
  func.func @transform_3(%arg0: i32) -> (i32, i32) {
    %c0_i32 = arith.constant 0 : i32
    %c0_i32_0 = arith.constant 0 : i32
    %c0_i32_1 = arith.constant 0 : i32
    return %c0_i32, %c0_i32_0 : i32, i32
  }
  func.func @transform_4(%arg0: i32) -> (i32, i32) {
    %c0_i32 = arith.constant 0 : i32
    %c0_i32_0 = arith.constant 0 : i32
    %c0_i32_1 = arith.constant 0 : i32
    return %c0_i32, %c0_i32_0 : i32, i32
  }
  func.func @transform_5(%arg0: i32) -> (i32, i32) {
    %c0_i32 = arith.constant 0 : i32
    %c0_i32_0 = arith.constant 0 : i32
    %c0_i32_1 = arith.constant 0 : i32
    return %c0_i32, %c0_i32_0 : i32, i32
  }
  func.func @transform_6(%arg0: i32) -> (i32, i32) {
    %c0_i32 = arith.constant 0 : i32
    %c0_i32_0 = arith.constant 0 : i32
    %c0_i32_1 = arith.constant 0 : i32
    return %c0_i32, %c0_i32_0 : i32, i32
  }
  func.func @transform_7(%arg0: i32) -> (i32, i32) {
    %c0_i32 = arith.constant 0 : i32
    %c0_i32_0 = arith.constant 0 : i32
    return %arg0, %c0_i32 : i32, i32
  }
}

</mosaic_0001>

<llo_original>
// kernel: actor_forward.1
$region0: #{actor_forward.1}
  #allocation0 [shape = 'u32[]', space=smem, size = 0x4, offset = 0x4, fixed_abs, tag = 'smem constant byte address 0x4 - core index']
  #allocation1 [shape = 'u32[144,128]{1,0:T(1,128)}', space=vmem, size = 0x12000, scoped, tag = 'internal scratch']
  %s0 = inlined_call_operand.vmem [shape: f32[8,11], index: 0, kind: input, shape index: {}]
  %s1 = inlined_call_operand.vmem [shape: f32[11,32], index: 1, kind: input, shape index: {}]
  %s2 = inlined_call_operand.vmem [shape: f32[1,32], index: 2, kind: input, shape index: {}]
  %s3 = inlined_call_operand.vmem [shape: f32[32,32], index: 3, kind: input, shape index: {}]
  %s4 = inlined_call_operand.hbm [shape: f32[1,32], index: 4, kind: input, shape index: {}]
  %s5 = inlined_call_operand.vmem [shape: f32[32,3], index: 5, kind: input, shape index: {}]
  %s6 = inlined_call_operand.hbm [shape: f32[1,3], index: 6, kind: input, shape index: {}]
  %s7 = inlined_call_operand.vmem [shape: f32[8,3], index: 7, kind: output, shape index: {}]
  %s8 = sld [smem:[#allocation0]]
  $region46: #{actor_forward.1} parent=0
    _
  %s10 = ssub.s32 1, %s8
  %s11 = scalar_select 0, %s10, %s8
  $region1: #{actor_forward.1} parent=0
    #allocation2 [shape = 'u8[512]{0}', space=vmem, size = 0x400, scoped, tag = 'input window, operand 4, single buffered']
    #allocation3 [shape = 's32[1]{0}', space=sflag, size = 0x4, scoped, tag = 'scoped memory for actor_forward.1']
    #allocation4 [shape = 'u8[512]{0}', space=vmem, size = 0x400, scoped, tag = 'input window, operand 6, single buffered']
    #allocation5 [shape = 's32[1]{0}', space=sflag, size = 0x4, scoped, tag = 'scoped memory for actor_forward.1']
    %12 = vsyncpa [#allocation3], 0
    %13 = vsyncpa [#allocation5], 0
    // Predicated region
    $region2: #{actor_forward.1} parent=1 // pred_check
      _
    $region3: #{actor_forward.1} parent=1 // pred_check_branch
      %15 = sbr.rel (0) target = $region5
    $region4: #{actor_forward.1} parent=1 // pred_region
      _
    $region5: #{actor_forward.1} parent=1 // pred_fallthru
      _
    // Predicated region
    $region6: #{actor_forward.1} parent=1 // pred_check
      _
    $region7: #{actor_forward.1} parent=1 // pred_check_branch
      %17 = sbr.rel (0) target = $region9
    $region8: #{actor_forward.1} parent=1 // pred_region
      _
    $region9: #{actor_forward.1} parent=1 // pred_fallthru
      _
    // Predicated region
    $region10: #{actor_forward.1} parent=1 // pred_check
      _
    $region11: #{actor_forward.1} parent=1 // pred_check_branch
      %19 = sbr.rel (0) target = $region13
    $region12: #{actor_forward.1} parent=1 // pred_region
      _
    $region13: #{actor_forward.1} parent=1 // pred_fallthru
      _
    // Predicated region
    $region14: #{actor_forward.1} parent=1 // pred_check
      _
    $region15: #{actor_forward.1} parent=1 // pred_check_branch
      %21 = sbr.rel (0) target = $region17
    $region16: #{actor_forward.1} parent=1 // pred_region
      _
    $region17: #{actor_forward.1} parent=1 // pred_fallthru
      _
    // Predicated region
    $region18: #{actor_forward.1} parent=1 // pred_check
      _
    $region19: #{actor_forward.1} parent=1 // pred_check_branch
      %23 = sbr.rel (0) target = $region21
    $region20: #{actor_forward.1} parent=1 // pred_region
      %s25 = ssub.s32 16, 16
      %26 = vsyncadd [#allocation3], %s25
      %s28 = sshll.u32 [#allocation2], 4
      %s29 = int_to_ptr.vmem [resolvable:$true] %s28
      %31 = dma.hbm_to_vmem [thread:$0]  %s4, 16, %s29, [#allocation3]
    $region21: #{actor_forward.1} parent=1 // pred_fallthru
      _
    // Predicated region
    $region22: #{actor_forward.1} parent=1 // pred_check
      _
    $region23: #{actor_forward.1} parent=1 // pred_check_branch
      %33 = sbr.rel (0) target = $region25
    $region24: #{actor_forward.1} parent=1 // pred_region
      _
    $region25: #{actor_forward.1} parent=1 // pred_fallthru
      _
    // Predicated region
    $region26: #{actor_forward.1} parent=1 // pred_check
      _
    $region27: #{actor_forward.1} parent=1 // pred_check_branch
      %35 = sbr.rel (0) target = $region29
    $region28: #{actor_forward.1} parent=1 // pred_region
      %s37 = ssub.s32 16, 16
      %38 = vsyncadd [#allocation5], %s37
      %s40 = sshll.u32 [#allocation4], 4
      %s41 = int_to_ptr.vmem [resolvable:$true] %s40
      %43 = dma.hbm_to_vmem [thread:$0]  %s6, 16, %s41, [#allocation5]
    $region29: #{actor_forward.1} parent=1 // pred_fallthru
      _
    // Predicated region
    $region30: #{actor_forward.1} parent=1 // pred_check
      _
    $region31: #{actor_forward.1} parent=1 // pred_check_branch
      %45 = sbr.rel (0) target = $region33
    $region32: #{actor_forward.1} parent=1 // pred_region
      %46 = dma.done [#allocation3], 16
    $region33: #{actor_forward.1} parent=1 // pred_fallthru
      _
    // Predicated region
    $region34: #{actor_forward.1} parent=1 // pred_check
      _
    $region35: #{actor_forward.1} parent=1 // pred_check_branch
      %48 = sbr.rel (0) target = $region37
    $region36: #{actor_forward.1} parent=1 // pred_region
      %49 = dma.done [#allocation5], 16
    $region37: #{actor_forward.1} parent=1 // pred_fallthru
      _
    %v50 = vld [vmem:[%s0] sm:$0xff]
    %v51 = vld [vmem:[%s1] sm:$0xff]
    %v52 = vld [vmem:[%s1 + $0x8] sm:$0x7]
    %v53 = vld [vmem:[%s2] sm:$0x1]
    %v55 = vlaneseq
    %v56 = vshrl.u32 %v55, 7
    %v57 = vsub.s32 0, %v56
    %v58 = vrot.slane %v53, %v57
    %vm60 = vcmask 89088
    %v62 = vsel %vm60, %v50, 0
    %vm64 = vcmask 1042432
    %v66 = vsel %vm64, %v52, 0
    %68 = vmatprep.subr.mxu0 0.0
    %69 = vmatpush1.msra.mxu0 0.0
    %70 = vmatprep.subr.mxu0 0.0
    %71 = vmatpush1.msra.mxu0 0.0
    %72 = vmatprep.subr.mxu0 0.0
    %73 = vmatpush1.msra.mxu0 0.0
    %74 = vmatprep.subr.mxu0 0.0
    %75 = vmatpush1.msra.mxu0 0.0
    %76 = vmatprep.subr.mxu0 0.0
    %77 = vmatpush1.msra.mxu0 0.0
    %78 = vmatprep.subr.mxu0 0.0
    %79 = vmatpush1.msra.mxu0 0.0
    %80 = vmatprep.subr.mxu0 0.0
    %81 = vmatpush1.msra.mxu0 0.0
    %82 = vmatprep.subr.mxu0 0.0
    %83 = vmatpush1.msra.mxu0 0.0
    %84 = vmatprep.subr.mxu0 0.0
    %85 = vmatpush1.msra.mxu0 0.0
    %86 = vmatprep.subr.mxu0 0.0
    %87 = vmatpush1.msra.mxu0 0.0
    %88 = vmatprep.subr.mxu0 0.0
    %89 = vmatpush1.msra.mxu0 0.0
    %90 = vmatprep.subr.mxu0 0.0
    %91 = vmatpush1.msra.mxu0 0.0
    %92 = vmatprep.subr.mxu0 0.0
    %93 = vmatpush1.msra.mxu0 0.0
    %94 = vmatprep.subr.mxu0 0.0
    %95 = vmatpush1.msra.mxu0 0.0
    %96 = vmatprep.subr.mxu0 0.0
    %97 = vmatpush1.msra.mxu0 %v66
    %98 = vmatprep.subr.mxu0 0.0
    %99 = vmatpush1.msra.mxu0 %v51
    %100 = vmatprep.subr.mxu0 0.0
    %101 = vmatpush2.msra.mxu0 0.0
    %102 = vmatprep.subr.mxu0 0.0
    %103 = vmatpush2.msra.mxu0 0.0
    %104 = vmatprep.subr.mxu0 0.0
    %105 = vmatpush2.msra.mxu0 0.0
    %106 = vmatprep.subr.mxu0 0.0
    %107 = vmatpush2.msra.mxu0 0.0
    %108 = vmatprep.subr.mxu0 0.0
    %109 = vmatpush2.msra.mxu0 0.0
    %110 = vmatprep.subr.mxu0 0.0
    %111 = vmatpush2.msra.mxu0 0.0
    %112 = vmatprep.subr.mxu0 0.0
    %113 = vmatpush2.msra.mxu0 0.0
    %114 = vmatprep.subr.mxu0 0.0
    %115 = vmatpush2.msra.mxu0 0.0
    %116 = vmatprep.subr.mxu0 0.0
    %117 = vmatpush2.msra.mxu0 0.0
    %118 = vmatprep.subr.mxu0 0.0
    %119 = vmatpush2.msra.mxu0 0.0
    %120 = vmatprep.subr.mxu0 0.0
    %121 = vmatpush2.msra.mxu0 0.0
    %122 = vmatprep.subr.mxu0 0.0
    %123 = vmatpush2.msra.mxu0 0.0
    %124 = vmatprep.subr.mxu0 0.0
    %125 = vmatpush2.msra.mxu0 0.0
    %126 = vmatprep.subr.mxu0 0.0
    %127 = vmatpush2.msra.mxu0 0.0
    %128 = vmatprep.subr.mxu0 0.0
    %129 = vmatpush2.msra.mxu0 0.0
    %130 = vmatprep.subr.mxu0 0.0
    %131 = vmatpush2.msra.mxu0 0.0
    %132 = vmatprep.mubr.f32.mxu0 0.0
    %133 = vmatmul.mubr.f32.gmra.mxu0 %v62
    %v134 = vpop.f32.mrf.mxu0
    %v135 = vadd.f32 %v58, %v134
    %v136 = vpop.f32.mrf.mxu0
    %137 = vdwg.mxu0
    %v138 = vmax.f32 %v135, 0.0
    %v139 = vld [vmem:[%s3] sm:$0xff]
    %v140 = vld [vmem:[%s3 + $0x8] sm:$0xff]
    %v141 = vld [vmem:[%s3 + $0x10] sm:$0xff]
    %v142 = vld [vmem:[%s3 + $0x18] sm:$0xff]
    %v143 = vld [vmem:[#allocation2] sm:$0x1]
    %v145 = vlaneseq
    %v146 = vshrl.u32 %v145, 7
    %v147 = vsub.s32 0, %v146
    %v148 = vrot.slane %v143, %v147
    %vm150 = vcmask 261120
    %v152 = vsel %vm150, %v138, 0
    %154 = vmatprep.subr.mxu0 0.0
    %155 = vmatpush1.msra.mxu0 0.0
    %156 = vmatprep.subr.mxu0 0.0
    %157 = vmatpush1.msra.mxu0 0.0
    %158 = vmatprep.subr.mxu0 0.0
    %159 = vmatpush1.msra.mxu0 0.0
    %160 = vmatprep.subr.mxu0 0.0
    %161 = vmatpush1.msra.mxu0 0.0
    %162 = vmatprep.subr.mxu0 0.0
    %163 = vmatpush1.msra.mxu0 0.0
    %164 = vmatprep.subr.mxu0 0.0
    %165 = vmatpush1.msra.mxu0 0.0
    %166 = vmatprep.subr.mxu0 0.0
    %167 = vmatpush1.msra.mxu0 0.0
    %168 = vmatprep.subr.mxu0 0.0
    %169 = vmatpush1.msra.mxu0 0.0
    %170 = vmatprep.subr.mxu0 0.0
    %171 = vmatpush1.msra.mxu0 0.0
    %172 = vmatprep.subr.mxu0 0.0
    %173 = vmatpush1.msra.mxu0 0.0
    %174 = vmatprep.subr.mxu0 0.0
    %175 = vmatpush1.msra.mxu0 0.0
    %176 = vmatprep.subr.mxu0 0.0
    %177 = vmatpush1.msra.mxu0 0.0
    %178 = vmatprep.subr.mxu0 0.0
    %179 = vmatpush1.msra.mxu0 %v142
    %180 = vmatprep.subr.mxu0 0.0
    %181 = vmatpush1.msra.mxu0 %v141
    %182 = vmatprep.subr.mxu0 0.0
    %183 = vmatpush1.msra.mxu0 %v140
    %184 = vmatprep.subr.mxu0 0.0
    %185 = vmatpush1.msra.mxu0 %v139
    %186 = vmatprep.subr.mxu0 0.0
    %187 = vmatpush2.msra.mxu0 0.0
    %188 = vmatprep.subr.mxu0 0.0
    %189 = vmatpush2.msra.mxu0 0.0
    %190 = vmatprep.subr.mxu0 0.0
    %191 = vmatpush2.msra.mxu0 0.0
    %192 = vmatprep.subr.mxu0 0.0
    %193 = vmatpush2.msra.mxu0 0.0
    %194 = vmatprep.subr.mxu0 0.0
    %195 = vmatpush2.msra.mxu0 0.0
    %196 = vmatprep.subr.mxu0 0.0
    %197 = vmatpush2.msra.mxu0 0.0
    %198 = vmatprep.subr.mxu0 0.0
    %199 = vmatpush2.msra.mxu0 0.0
    %200 = vmatprep.subr.mxu0 0.0
    %201 = vmatpush2.msra.mxu0 0.0
    %202 = vmatprep.subr.mxu0 0.0
    %203 = vmatpush2.msra.mxu0 0.0
    %204 = vmatprep.subr.mxu0 0.0
    %205 = vmatpush2.msra.mxu0 0.0
    %206 = vmatprep.subr.mxu0 0.0
    %207 = vmatpush2.msra.mxu0 0.0
    %208 = vmatprep.subr.mxu0 0.0
    %209 = vmatpush2.msra.mxu0 0.0
    %210 = vmatprep.subr.mxu0 0.0
    %211 = vmatpush2.msra.mxu0 0.0
    %212 = vmatprep.subr.mxu0 0.0
    %213 = vmatpush2.msra.mxu0 0.0
    %214 = vmatprep.subr.mxu0 0.0
    %215 = vmatpush2.msra.mxu0 0.0
    %216 = vmatprep.subr.mxu0 0.0
    %217 = vmatpush2.msra.mxu0 0.0
    %218 = vmatprep.mubr.f32.mxu0 0.0
    %219 = vmatmul.mubr.f32.gmra.mxu0 %v152
    %v220 = vpop.f32.mrf.mxu0
    %v221 = vadd.f32 %v148, %v220
    %v222 = vpop.f32.mrf.mxu0
    %223 = vdwg.mxu0
    %v224 = vmax.f32 %v221, 0.0
    %v225 = vld [vmem:[%s5] sm:$0xff]
    %v226 = vld [vmem:[%s5 + $0x8] sm:$0xff]
    %v227 = vld [vmem:[%s5 + $0x10] sm:$0xff]
    %v228 = vld [vmem:[%s5 + $0x18] sm:$0xff]
    %v229 = vld [vmem:[#allocation4] sm:$0x1]
    %v231 = vlaneseq
    %v232 = vshrl.u32 %v231, 7
    %v233 = vsub.s32 0, %v232
    %v234 = vrot.slane %v229, %v233
    %v237 = vsel %vm150, %v224, 0
    %239 = vmatprep.subr.mxu0 0.0
    %240 = vmatpush1.msra.mxu0 0.0
    %241 = vmatprep.subr.mxu0 0.0
    %242 = vmatpush1.msra.mxu0 0.0
    %243 = vmatprep.subr.mxu0 0.0
    %244 = vmatpush1.msra.mxu0 0.0
    %245 = vmatprep.subr.mxu0 0.0
    %246 = vmatpush1.msra.mxu0 0.0
    %247 = vmatprep.subr.mxu0 0.0
    %248 = vmatpush1.msra.mxu0 0.0
    %249 = vmatprep.subr.mxu0 0.0
    %250 = vmatpush1.msra.mxu0 0.0
    %251 = vmatprep.subr.mxu0 0.0
    %252 = vmatpush1.msra.mxu0 0.0
    %253 = vmatprep.subr.mxu0 0.0
    %254 = vmatpush1.msra.mxu0 0.0
    %255 = vmatprep.subr.mxu0 0.0
    %256 = vmatpush1.msra.mxu0 0.0
    %257 = vmatprep.subr.mxu0 0.0
    %258 = vmatpush1.msra.mxu0 0.0
    %259 = vmatprep.subr.mxu0 0.0
    %260 = vmatpush1.msra.mxu0 0.0
    %261 = vmatprep.subr.mxu0 0.0
    %262 = vmatpush1.msra.mxu0 0.0
    %263 = vmatprep.subr.mxu0 0.0
    %264 = vmatpush1.msra.mxu0 %v228
    %265 = vmatprep.subr.mxu0 0.0
    %266 = vmatpush1.msra.mxu0 %v227
    %267 = vmatprep.subr.mxu0 0.0
    %268 = vmatpush1.msra.mxu0 %v226
    %269 = vmatprep.subr.mxu0 0.0
    %270 = vmatpush1.msra.mxu0 %v225
    %271 = vmatprep.subr.mxu0 0.0
    %272 = vmatpush2.msra.mxu0 0.0
    %273 = vmatprep.subr.mxu0 0.0
    %274 = vmatpush2.msra.mxu0 0.0
    %275 = vmatprep.subr.mxu0 0.0
    %276 = vmatpush2.msra.mxu0 0.0
    %277 = vmatprep.subr.mxu0 0.0
    %278 = vmatpush2.msra.mxu0 0.0
    %279 = vmatprep.subr.mxu0 0.0
    %280 = vmatpush2.msra.mxu0 0.0
    %281 = vmatprep.subr.mxu0 0.0
    %282 = vmatpush2.msra.mxu0 0.0
    %283 = vmatprep.subr.mxu0 0.0
    %284 = vmatpush2.msra.mxu0 0.0
    %285 = vmatprep.subr.mxu0 0.0
    %286 = vmatpush2.msra.mxu0 0.0
    %287 = vmatprep.subr.mxu0 0.0
    %288 = vmatpush2.msra.mxu0 0.0
    %289 = vmatprep.subr.mxu0 0.0
    %290 = vmatpush2.msra.mxu0 0.0
    %291 = vmatprep.subr.mxu0 0.0
    %292 = vmatpush2.msra.mxu0 0.0
    %293 = vmatprep.subr.mxu0 0.0
    %294 = vmatpush2.msra.mxu0 0.0
    %295 = vmatprep.subr.mxu0 0.0
    %296 = vmatpush2.msra.mxu0 0.0
    %297 = vmatprep.subr.mxu0 0.0
    %298 = vmatpush2.msra.mxu0 0.0
    %299 = vmatprep.subr.mxu0 0.0
    %300 = vmatpush2.msra.mxu0 0.0
    %301 = vmatprep.subr.mxu0 0.0
    %302 = vmatpush2.msra.mxu0 0.0
    %303 = vmatprep.mubr.f32.mxu0 0.0
    %304 = vmatmul.mubr.f32.gmra.mxu0 %v237
    %v305 = vpop.f32.mrf.mxu0
    %v306 = vadd.f32 %v234, %v305
    %v307 = vpop.f32.mrf.mxu0
    %308 = vdwg.mxu0
    %vm309 = vcmask 23552
    %310 = vst.msk [vmem:[%s7] sm:$0xff] %vm309, %v306
    // Predicated region
    $region38: #{actor_forward.1} parent=1 // pred_check
      _
    $region39: #{actor_forward.1} parent=1 // pred_check_branch
      %312 = sbr.rel (0) target = $region41
    $region40: #{actor_forward.1} parent=1 // pred_region
      _
    $region41: #{actor_forward.1} parent=1 // pred_fallthru
      _
    // Predicated region
    $region42: #{actor_forward.1} parent=1 // pred_check
      _
    $region43: #{actor_forward.1} parent=1 // pred_check_branch
      %314 = sbr.rel (0) target = $region45
    $region44: #{actor_forward.1} parent=1 // pred_region
      _
    $region45: #{actor_forward.1} parent=1 // pred_fallthru
      _
    %315 = vsyncpa [#allocation3], 1
    %316 = vsyncpa [#allocation5], 1

</llo_original>
